<compile_context>
chip_gen: v7x
topology: tpu7x:2x2x1
jax: 0.10.0
libtpu: 0.0.40
codegen_flags: <defaults>
</compile_context>

<pallas_src>
import functools

import jax
import jax.numpy as jnp
from jax.experimental import pallas as pl
from jax.experimental.pallas import tpu as pltpu


# ---------------------------------------------------------------------------
# Kernel
# ---------------------------------------------------------------------------
def mlp_kernel(x_ref, w1_ref, b1_ref, w2_ref, b2_ref, w3_ref, b3_ref, o_ref,
               *, compute_dtype, act_dtype):
    # x arrives in f32 straight from HBM; cast in-kernel (free VPU work).
    x = x_ref[...].astype(compute_dtype)

    # Layer 1: MXU matmul with f32 accumulation, f32 bias add, tanh in
    # act_dtype (bf16 on v6e/v7x fast path, f32 on the validation path).
    a1 = jnp.dot(x, w1_ref[...], preferred_element_type=jnp.float32) + b1_ref[...]
    h1 = jnp.tanh(a1.astype(act_dtype)).astype(compute_dtype)

    # Layer 2
    a2 = jnp.dot(h1, w2_ref[...], preferred_element_type=jnp.float32) + b2_ref[...]
    h2 = jnp.tanh(a2.astype(act_dtype)).astype(compute_dtype)

    # Layer 3 (no activation); lane-dense padded output store.
    out = jnp.dot(h2, w3_ref[...], preferred_element_type=jnp.float32) + b3_ref[...]
    o_ref[...] = out.astype(o_ref.dtype)


# ---------------------------------------------------------------------------
# Wrapper helpers
# ---------------------------------------------------------------------------
def _round_up(n, m):
    return ((n + m - 1) // m) * m


def _pad_to(a, shape):
    pads = [(0, t - s) for s, t in zip(a.shape, shape)]
    return jnp.pad(a, pads)


def prepare_padded_params(params, compute_dtype=jnp.bfloat16):
    """One-time pad + cast of weights/biases (hoisted out of the forward)."""
    F_in, H1 = params["w1"].shape
    H2 = params["w2"].shape[1]
    F_out = params["w3"].shape[1]

    H1p = _round_up(H1, 128)               # 200 -> 256
    H2p = _round_up(H2, 128)               # 200 -> 256
    Fop = max(_round_up(F_out, 128), 128)  # 6 -> 128 (lane-dense output)

    return {
        "w1": _pad_to(params["w1"], (F_in, H1p)).astype(compute_dtype),
        "b1": _pad_to(params["b1"], (1, H1p)).astype(jnp.float32),
        "w2": _pad_to(params["w2"], (H1p, H2p)).astype(compute_dtype),
        "b2": _pad_to(params["b2"], (1, H2p)).astype(jnp.float32),
        "w3": _pad_to(params["w3"], (H2p, Fop)).astype(compute_dtype),
        "b3": _pad_to(params["b3"], (1, Fop)).astype(jnp.float32),
        "f_out": F_out,
    }


def _choose_bm(B, *, bm_max=4096, align=256):
    """Large batch tile (amortize grid overhead), but >=2 grid steps when the
    batch allows it so v7x's two TensorCores both get work."""
    Bp = _round_up(B, align)
    half = _round_up(max(Bp // 2, align), align)
    return max(align, min(bm_max, half))


def mlp_forward(x, padded_params, *, compute_dtype=jnp.bfloat16,
                act_dtype=None, out_dtype=None, bm=None):
    """x: (B, input_size) float32. padded_params: output of prepare_padded_params."""
    if act_dtype is None:
        act_dtype = compute_dtype
    if out_dtype is None:
        out_dtype = compute_dtype

    B, F_in = x.shape
    w1p, b1p = padded_params["w1"], padded_params["b1"]
    w2p, b2p = padded_params["w2"], padded_params["b2"]
    w3p, b3p = padded_params["w3"], padded_params["b3"]
    F_out = padded_params["f_out"]
    H1p, H2p, Fop = w1p.shape[1], w2p.shape[1], w3p.shape[1]

    if bm is None:
        bm = _choose_bm(B)
    grid = (pl.cdiv(B, bm),)   # tail block handled by Pallas masking

    kernel = functools.partial(
        mlp_kernel, compute_dtype=compute_dtype, act_dtype=act_dtype)

    out_padded = pl.pallas_call(
        kernel,
        out_shape=jax.ShapeDtypeStruct((B, Fop), out_dtype),
        grid_spec=pltpu.PrefetchScalarGridSpec(
            num_scalar_prefetch=0,
            grid=grid,
            in_specs=[
                pl.BlockSpec((bm, F_in), lambda i: (i, 0)),    # x tile (f32, cast in-kernel)
                pl.BlockSpec((F_in, H1p), lambda i: (0, 0)),   # w1 (resident)
                pl.BlockSpec((1, H1p), lambda i: (0, 0)),      # b1
                pl.BlockSpec((H1p, H2p), lambda i: (0, 0)),    # w2 (resident)
                pl.BlockSpec((1, H2p), lambda i: (0, 0)),      # b2
                pl.BlockSpec((H2p, Fop), lambda i: (0, 0)),    # w3 (resident)
                pl.BlockSpec((1, Fop), lambda i: (0, 0)),      # b3
            ],
            out_specs=pl.BlockSpec((bm, Fop), lambda i: (i, 0)),
        ),
        compiler_params=pltpu.CompilerParams(
            dimension_semantics=("parallel",),       # megacore sharding on v7x
            vmem_limit_bytes=48 * 1024 * 1024,       # v5e default 16MiB too tight at large bm
        ),
    )(x, w1p, b1p, w2p, b2p, w3p, b3p)

    # Tiny slice/cast in the wrapper; the big per-step store stayed lane-dense.
    return out_padded[:, :F_out].astype(jnp.float32)


# ---------------------------------------------------------------------------
# Reference / init (mirrors PyTorch nn.Linear defaults)
# ---------------------------------------------------------------------------
def init_params(key, input_size=48, hidden=200, output_size=6):
    ks = jax.random.split(key, 6)

    def lin(kw, kb, fan_in, fan_out):
        bound = 1.0 / jnp.sqrt(jnp.float32(fan_in))
        # stored (in, out): x @ W  ==  PyTorch x @ W.T with W (out, in)
        w = jax.random.uniform(kw, (fan_in, fan_out), jnp.float32, -bound, bound)
        b = jax.random.uniform(kb, (1, fan_out), jnp.float32, -bound, bound)
        return w, b

    w1, b1 = lin(ks[0], ks[1], input_size, hidden)
    w2, b2 = lin(ks[2], ks[3], hidden, hidden)
    w3, b3 = lin(ks[4], ks[5], hidden, output_size)
    return {"w1": w1, "b1": b1, "w2": w2, "b2": b2, "w3": w3, "b3": b3}


def mlp_reference(x, p):
    h1 = jnp.tanh(x @ p["w1"] + p["b1"])
    h2 = jnp.tanh(h1 @ p["w2"] + p["b2"])
    return h2 @ p["w3"] + p["b3"]


if __name__ == "__main__":
    key = jax.random.PRNGKey(0)
    k_params, k_x = jax.random.split(key)

    input_size, output_size, batch = 48, 6, 16
    params = init_params(k_params, input_size=input_size, output_size=output_size)
    x = jax.random.normal(k_x, (batch, input_size), dtype=jnp.float32)

    ref = mlp_reference(x, params)

    # Full-f32 path: strict numerical check against the pure-JAX reference.
    p_f32 = prepare_padded_params(params, compute_dtype=jnp.float32)
    out_f32 = jax.block_until_ready(
        mlp_forward(x, p_f32, compute_dtype=jnp.float32,
                    act_dtype=jnp.float32, out_dtype=jnp.float32))
    assert out_f32.shape == (batch, output_size)
    assert jnp.allclose(out_f32, ref, atol=1e-5, rtol=1e-5), "f32 mismatch vs reference"

    # bf16 fast path (bf16 operands, bf16 tanh, bf16 writeback, f32 MXU acc).
    p_bf16 = prepare_padded_params(params, compute_dtype=jnp.bfloat16)
    out_bf16 = jax.block_until_ready(mlp_forward(x, p_bf16))
    assert out_bf16.shape == (batch, output_size)
    assert jnp.allclose(out_bf16, ref, atol=5e-2, rtol=5e-2), "bf16 mismatch vs reference"

    print("KERNEL_OK")
</pallas_src>

<mosaic_0001>
module attributes {stable_mosaic.version = 11 : i64} {
  func.func @mlp_kernel(%arg0: i32, %arg1: memref<256x48xf32, #tpu.memory_space<vmem>>, %arg2: memref<48x256xf32, #tpu.memory_space<vmem>>, %arg3: memref<1x256xf32, #tpu.memory_space<vmem>>, %arg4: memref<256x256xf32, #tpu.memory_space<vmem>>, %arg5: memref<1x256xf32, #tpu.memory_space<vmem>>, %arg6: memref<256x128xf32, #tpu.memory_space<vmem>>, %arg7: memref<1x128xf32, #tpu.memory_space<vmem>>, %arg8: memref<256x128xf32, #tpu.memory_space<vmem>>) attributes {dimension_semantics = [#tpu.dimension_semantics<parallel>], iteration_bounds = array<i64: 1>, scalar_prefetch = 0 : i64, scratch_operands = 0 : i64, tpu.core_type = #tpu.core_type<tc>, window_params = [{transform_indices = @transform_0, window_bounds = array<i64: 256, 48>}, {pipeline_mode = #tpu.pipeline_mode<synchronous>, transform_indices = @transform_1, window_bounds = array<i64: 48, 256>}, {pipeline_mode = #tpu.pipeline_mode<synchronous>, transform_indices = @transform_2, window_bounds = array<i64: 1, 256>}, {pipeline_mode = #tpu.pipeline_mode<synchronous>, transform_indices = @transform_3, window_bounds = array<i64: 256, 256>}, {pipeline_mode = #tpu.pipeline_mode<synchronous>, transform_indices = @transform_4, window_bounds = array<i64: 1, 256>}, {pipeline_mode = #tpu.pipeline_mode<synchronous>, transform_indices = @transform_5, window_bounds = array<i64: 256, 128>}, {pipeline_mode = #tpu.pipeline_mode<synchronous>, transform_indices = @transform_6, window_bounds = array<i64: 1, 128>}, {transform_indices = @transform_7, window_bounds = array<i64: 256, 128>}]} {
    %c0 = arith.constant 0 : index
    %c0_0 = arith.constant 0 : index
    %0 = vector.load %arg1[%c0, %c0_0] : memref<256x48xf32, #tpu.memory_space<vmem>>, vector<256x48xf32>
    %c0_1 = arith.constant 0 : index
    %c0_2 = arith.constant 0 : index
    %1 = vector.load %arg2[%c0_1, %c0_2] : memref<48x256xf32, #tpu.memory_space<vmem>>, vector<48x256xf32>
    %cst = arith.constant dense<0.000000e+00> : vector<256x256xf32>
    %2 = tpu.matmul %0, %1, %cst {dimension_numbers = #tpu.dot_dimension_numbers<[1], [0], [0], [1], [0, 0, 1, 1], [], []>} : vector<256x48xf32>, vector<48x256xf32>, vector<256x256xf32> -> vector<256x256xf32>
    %c0_3 = arith.constant 0 : index
    %c0_4 = arith.constant 0 : index
    %3 = vector.load %arg3[%c0_3, %c0_4] : memref<1x256xf32, #tpu.memory_space<vmem>>, vector<1x256xf32>
    %4 = vector.broadcast %3 : vector<1x256xf32> to vector<256x256xf32>
    %5 = arith.addf %2, %4 : vector<256x256xf32>
    %6 = math.tanh %5 : vector<256x256xf32>
    %c0_5 = arith.constant 0 : index
    %c0_6 = arith.constant 0 : index
    %7 = vector.load %arg4[%c0_5, %c0_6] : memref<256x256xf32, #tpu.memory_space<vmem>>, vector<256x256xf32>
    %cst_7 = arith.constant dense<0.000000e+00> : vector<256x256xf32>
    %8 = tpu.matmul %6, %7, %cst_7 {dimension_numbers = #tpu.dot_dimension_numbers<[1], [0], [0], [1], [0, 0, 1, 1], [], []>} : vector<256x256xf32>, vector<256x256xf32>, vector<256x256xf32> -> vector<256x256xf32>
    %c0_8 = arith.constant 0 : index
    %c0_9 = arith.constant 0 : index
    %9 = vector.load %arg5[%c0_8, %c0_9] : memref<1x256xf32, #tpu.memory_space<vmem>>, vector<1x256xf32>
    %10 = vector.broadcast %9 : vector<1x256xf32> to vector<256x256xf32>
    %11 = arith.addf %8, %10 : vector<256x256xf32>
    %12 = math.tanh %11 : vector<256x256xf32>
    %c0_10 = arith.constant 0 : index
    %c0_11 = arith.constant 0 : index
    %13 = vector.load %arg6[%c0_10, %c0_11] : memref<256x128xf32, #tpu.memory_space<vmem>>, vector<256x128xf32>
    %cst_12 = arith.constant dense<0.000000e+00> : vector<256x128xf32>
    %14 = tpu.matmul %12, %13, %cst_12 {dimension_numbers = #tpu.dot_dimension_numbers<[1], [0], [0], [1], [0, 0, 1, 1], [], []>} : vector<256x256xf32>, vector<256x128xf32>, vector<256x128xf32> -> vector<256x128xf32>
    %c0_13 = arith.constant 0 : index
    %c0_14 = arith.constant 0 : index
    %15 = vector.load %arg7[%c0_13, %c0_14] : memref<1x128xf32, #tpu.memory_space<vmem>>, vector<1x128xf32>
    %16 = vector.broadcast %15 : vector<1x128xf32> to vector<256x128xf32>
    %17 = arith.addf %14, %16 : vector<256x128xf32>
    %c0_15 = arith.constant 0 : index
    %c0_16 = arith.constant 0 : index
    %18 = vector.load %arg8[%c0_15, %c0_16] : memref<256x128xf32, #tpu.memory_space<vmem>>, vector<256x128xf32>
    tpu.vector_store %arg8[%c0_15, %c0_16], %17 {strides = array<i32>} : memref<256x128xf32, #tpu.memory_space<vmem>>, vector<256x128xf32>,
    return
  }
  func.func @transform_0(%arg0: i32) -> (i32, i32) {
    %c0_i32 = arith.constant 0 : i32
    %c0_i32_0 = arith.constant 0 : i32
    return %arg0, %c0_i32 : i32, i32
  }
  func.func @transform_1(%arg0: i32) -> (i32, i32) {
    %c0_i32 = arith.constant 0 : i32
    %c0_i32_0 = arith.constant 0 : i32
    %c0_i32_1 = arith.constant 0 : i32
    return %c0_i32, %c0_i32_0 : i32, i32
  }
  func.func @transform_2(%arg0: i32) -> (i32, i32) {
    %c0_i32 = arith.constant 0 : i32
    %c0_i32_0 = arith.constant 0 : i32
    %c0_i32_1 = arith.constant 0 : i32
    return %c0_i32, %c0_i32_0 : i32, i32
  }
  func.func @transform_3(%arg0: i32) -> (i32, i32) {
    %c0_i32 = arith.constant 0 : i32
    %c0_i32_0 = arith.constant 0 : i32
    %c0_i32_1 = arith.constant 0 : i32
    return %c0_i32, %c0_i32_0 : i32, i32
  }
  func.func @transform_4(%arg0: i32) -> (i32, i32) {
    %c0_i32 = arith.constant 0 : i32
    %c0_i32_0 = arith.constant 0 : i32
    %c0_i32_1 = arith.constant 0 : i32
    return %c0_i32, %c0_i32_0 : i32, i32
  }
  func.func @transform_5(%arg0: i32) -> (i32, i32) {
    %c0_i32 = arith.constant 0 : i32
    %c0_i32_0 = arith.constant 0 : i32
    %c0_i32_1 = arith.constant 0 : i32
    return %c0_i32, %c0_i32_0 : i32, i32
  }
  func.func @transform_6(%arg0: i32) -> (i32, i32) {
    %c0_i32 = arith.constant 0 : i32
    %c0_i32_0 = arith.constant 0 : i32
    %c0_i32_1 = arith.constant 0 : i32
    return %c0_i32, %c0_i32_0 : i32, i32
  }
  func.func @transform_7(%arg0: i32) -> (i32, i32) {
    %c0_i32 = arith.constant 0 : i32
    %c0_i32_0 = arith.constant 0 : i32
    return %arg0, %c0_i32 : i32, i32
  }
}

</mosaic_0001>

<llo_original>
// kernel: tpu_custom_call.1
$region0: #{tpu_custom_call.1}
  #allocation0 [shape = 'u32[]', space=smem, size = 0x4, offset = 0x4, fixed_abs, tag = 'smem constant byte address 0x4 - core index']
  #allocation1 [shape = 'u32[144,128]{1,0:T(1,128)}', space=vmem, size = 0x12000, scoped, tag = 'internal scratch']
  %s0 = inlined_call_operand.hbm [shape: f32[16,48], index: 0, kind: input, shape index: {}]
  %s1 = inlined_call_operand.hbm [shape: f32[48,256], index: 1, kind: input, shape index: {}]
  %s2 = inlined_call_operand.vmem [shape: f32[1,256], index: 2, kind: input, shape index: {}]
  %s3 = inlined_call_operand.hbm [shape: f32[256,256], index: 3, kind: input, shape index: {}]
  %s4 = inlined_call_operand.vmem [shape: f32[1,256], index: 4, kind: input, shape index: {}]
  %s5 = inlined_call_operand.hbm [shape: f32[256,128], index: 5, kind: input, shape index: {}]
  %s6 = inlined_call_operand.vmem [shape: f32[1,128], index: 6, kind: input, shape index: {}]
  %s7 = inlined_call_operand.hbm [shape: f32[16,128], index: 7, kind: output, shape index: {}]
  %s8 = sld [smem:[#allocation0]]
  $region54: #{tpu_custom_call.1} parent=0
    _
  %s10 = ssub.s32 1, %s8
  %s11 = scalar_select 0, %s10, %s8
  $region1: #{tpu_custom_call.1} parent=0
    #allocation2 [shape = 'u8[131072]{0}', space=vmem, size = 0x20000, scoped, tag = 'input window, operand 0, single buffered']
    #allocation3 [shape = 's32[1]{0}', space=sflag, size = 0x4, scoped, tag = 'scoped memory for tpu_custom_call.1']
    #allocation4 [shape = 's32[1]{0}', space=sflag, size = 0x4, scoped, tag = 'scoped memory for tpu_custom_call.1']
    #allocation5 [shape = 'u8[49152]{0}', space=vmem, size = 0xc000, scoped, tag = 'input window, operand 1, single buffered']
    #allocation6 [shape = 's32[1]{0}', space=sflag, size = 0x4, scoped, tag = 'scoped memory for tpu_custom_call.1']
    #allocation7 [shape = 'u8[262144]{0}', space=vmem, size = 0x40000, scoped, tag = 'input window, operand 3, single buffered']
    #allocation8 [shape = 'u8[131072]{0}', space=vmem, size = 0x20000, scoped, tag = 'input window, operand 5, single buffered']
    #allocation9 [shape = 's32[1]{0}', space=sflag, size = 0x4, scoped, tag = 'scoped memory for tpu_custom_call.1']
    #allocation10 [shape = 'u8[131072]{0}', space=vmem, size = 0x20000, scoped, tag = 'output window, operand 0, single buffered']
    %12 = vsyncpa [#allocation3], 0
    %13 = vsyncpa [#allocation6], 0
    %14 = vsyncpa [#allocation9], 0
    %15 = vsyncpa [#allocation4], 0
    // Predicated region
    $region2: #{tpu_custom_call.1} parent=1 // pred_check
      _
    $region3: #{tpu_custom_call.1} parent=1 // pred_check_branch
      %17 = sbr.rel (0) target = $region5
    $region4: #{tpu_custom_call.1} parent=1 // pred_region
      %s19 = ssub.s32 4096, 256
      %20 = vsyncadd [#allocation3], %s19
      %s21 = sshll.u32 [#allocation2], 4
      %s22 = int_to_ptr.vmem [resolvable:$true] %s21
      %27 = dma.hbm_to_vmem [thread:$0]  %s0, 256, %s22, [#allocation3], 128, 128, 8
    $region5: #{tpu_custom_call.1} parent=1 // pred_fallthru
      _
    // Predicated region
    $region6: #{tpu_custom_call.1} parent=1 // pred_check
      _
    $region7: #{tpu_custom_call.1} parent=1 // pred_check_branch
      %29 = sbr.rel (0) target = $region9
    $region8: #{tpu_custom_call.1} parent=1 // pred_region
      %s31 = ssub.s32 1536, 1536
      %32 = vsyncadd [#allocation6], %s31
      %s33 = sshll.u32 [#allocation5], 4
      %s34 = int_to_ptr.vmem [resolvable:$true] %s33
      %39 = dma.hbm_to_vmem [thread:$0]  %s1, 1536, %s34, [#allocation6], 256, 256, 16
    $region9: #{tpu_custom_call.1} parent=1 // pred_fallthru
      _
    // Predicated region
    $region10: #{tpu_custom_call.1} parent=1 // pred_check
      _
    $region11: #{tpu_custom_call.1} parent=1 // pred_check_branch
      %41 = sbr.rel (0) target = $region13
    $region12: #{tpu_custom_call.1} parent=1 // pred_region
      _
    $region13: #{tpu_custom_call.1} parent=1 // pred_fallthru
      _
    // Predicated region
    $region14: #{tpu_custom_call.1} parent=1 // pred_check
      _
    $region15: #{tpu_custom_call.1} parent=1 // pred_check_branch
      %43 = sbr.rel (0) target = $region17
    $region16: #{tpu_custom_call.1} parent=1 // pred_region
      %s45 = ssub.s32 8192, 8192
      %46 = vsyncadd [#allocation6], %s45
      %s47 = sshll.u32 [#allocation7], 4
      %s48 = int_to_ptr.vmem [resolvable:$true] %s47
      %53 = dma.hbm_to_vmem [thread:$0]  %s3, 8192, %s48, [#allocation6], 256, 256, 16
    $region17: #{tpu_custom_call.1} parent=1 // pred_fallthru
      _
    // Predicated region
    $region18: #{tpu_custom_call.1} parent=1 // pred_check
      _
    $region19: #{tpu_custom_call.1} parent=1 // pred_check_branch
      %55 = sbr.rel (0) target = $region21
    $region20: #{tpu_custom_call.1} parent=1 // pred_region
      _
    $region21: #{tpu_custom_call.1} parent=1 // pred_fallthru
      _
    // Predicated region
    $region22: #{tpu_custom_call.1} parent=1 // pred_check
      _
    $region23: #{tpu_custom_call.1} parent=1 // pred_check_branch
      %57 = sbr.rel (0) target = $region25
    $region24: #{tpu_custom_call.1} parent=1 // pred_region
      %s59 = ssub.s32 4096, 4096
      %60 = vsyncadd [#allocation9], %s59
      %s61 = sshll.u32 [#allocation8], 4
      %s62 = int_to_ptr.vmem [resolvable:$true] %s61
      %67 = dma.hbm_to_vmem [thread:$0]  %s5, 4096, %s62, [#allocation9], 128, 128, 8
    $region25: #{tpu_custom_call.1} parent=1 // pred_fallthru
      _
    // Predicated region
    $region26: #{tpu_custom_call.1} parent=1 // pred_check
      _
    $region27: #{tpu_custom_call.1} parent=1 // pred_check_branch
      %69 = sbr.rel (0) target = $region29
    $region28: #{tpu_custom_call.1} parent=1 // pred_region
      _
    $region29: #{tpu_custom_call.1} parent=1 // pred_fallthru
      _
    // Predicated region
    $region30: #{tpu_custom_call.1} parent=1 // pred_check
      _
    $region31: #{tpu_custom_call.1} parent=1 // pred_check_branch
      %71 = sbr.rel (0) target = $region33
    $region32: #{tpu_custom_call.1} parent=1 // pred_region
      %72 = dma.done [#allocation3], 4096
    $region33: #{tpu_custom_call.1} parent=1 // pred_fallthru
      _
    // Predicated region
    $region34: #{tpu_custom_call.1} parent=1 // pred_check
      _
    $region35: #{tpu_custom_call.1} parent=1 // pred_check_branch
      %74 = sbr.rel (0) target = $region37
    $region36: #{tpu_custom_call.1} parent=1 // pred_region
      %75 = dma.done [#allocation6], 1536
    $region37: #{tpu_custom_call.1} parent=1 // pred_fallthru
      _
    // Predicated region
    $region38: #{tpu_custom_call.1} parent=1 // pred_check
      _
    $region39: #{tpu_custom_call.1} parent=1 // pred_check_branch
      %77 = sbr.rel (0) target = $region41
    $region40: #{tpu_custom_call.1} parent=1 // pred_region
      %78 = dma.done [#allocation6], 8192
    $region41: #{tpu_custom_call.1} parent=1 // pred_fallthru
      _
    // Predicated region
    $region42: #{tpu_custom_call.1} parent=1 // pred_check
      _
    $region43: #{tpu_custom_call.1} parent=1 // pred_check_branch
      %80 = sbr.rel (0) target = $region45
    $region44: #{tpu_custom_call.1} parent=1 // pred_region
      %81 = dma.done [#allocation9], 4096
    $region45: #{tpu_custom_call.1} parent=1 // pred_fallthru
      _
    %v82 = vld [vmem:[#allocation2] sm:$0xff]
    %v83 = vld [vmem:[#allocation2 + $0x8] sm:$0xff]
    %v84 = vld [vmem:[#allocation2 + $0x10] sm:$0xff]
    %v85 = vld [vmem:[#allocation2 + $0x18] sm:$0xff]
    %v86 = vld [vmem:[#allocation2 + $0x20] sm:$0xff]
    %v87 = vld [vmem:[#allocation2 + $0x28] sm:$0xff]
    %v88 = vld [vmem:[#allocation2 + $0x30] sm:$0xff]
    %v89 = vld [vmem:[#allocation2 + $0x38] sm:$0xff]
    %v90 = vld [vmem:[#allocation2 + $0x40] sm:$0xff]
    %v91 = vld [vmem:[#allocation2 + $0x48] sm:$0xff]
    %v92 = vld [vmem:[#allocation2 + $0x50] sm:$0xff]
    %v93 = vld [vmem:[#allocation2 + $0x58] sm:$0xff]
    %v94 = vld [vmem:[#allocation2 + $0x60] sm:$0xff]
    %v95 = vld [vmem:[#allocation2 + $0x68] sm:$0xff]
    %v96 = vld [vmem:[#allocation2 + $0x70] sm:$0xff]
    %v97 = vld [vmem:[#allocation2 + $0x78] sm:$0xff]
    %v98 = vld [vmem:[#allocation2 + $0x80] sm:$0xff]
    %v99 = vld [vmem:[#allocation2 + $0x88] sm:$0xff]
    %v100 = vld [vmem:[#allocation2 + $0x90] sm:$0xff]
    %v101 = vld [vmem:[#allocation2 + $0x98] sm:$0xff]
    %v102 = vld [vmem:[#allocation2 + $0xa0] sm:$0xff]
    %v103 = vld [vmem:[#allocation2 + $0xa8] sm:$0xff]
    %v104 = vld [vmem:[#allocation2 + $0xb0] sm:$0xff]
    %v105 = vld [vmem:[#allocation2 + $0xb8] sm:$0xff]
    %v106 = vld [vmem:[#allocation2 + $0xc0] sm:$0xff]
    %v107 = vld [vmem:[#allocation2 + $0xc8] sm:$0xff]
    %v108 = vld [vmem:[#allocation2 + $0xd0] sm:$0xff]
    %v109 = vld [vmem:[#allocation2 + $0xd8] sm:$0xff]
    %v110 = vld [vmem:[#allocation2 + $0xe0] sm:$0xff]
    %v111 = vld [vmem:[#allocation2 + $0xe8] sm:$0xff]
    %v112 = vld [vmem:[#allocation2 + $0xf0] sm:$0xff]
    %v113 = vld [vmem:[#allocation2 + $0xf8] sm:$0xff]
    %v114 = vld [vmem:[#allocation5] sm:$0xff]
    %v115 = vld [vmem:[#allocation5 + $0x8] sm:$0xff]
    %v116 = vld [vmem:[#allocation5 + $0x10] sm:$0xff]
    %v117 = vld [vmem:[#allocation5 + $0x18] sm:$0xff]
    %v118 = vld [vmem:[#allocation5 + $0x20] sm:$0xff]
    %v119 = vld [vmem:[#allocation5 + $0x28] sm:$0xff]
    %v120 = vld [vmem:[#allocation5 + $0x30] sm:$0xff]
    %v121 = vld [vmem:[#allocation5 + $0x38] sm:$0xff]
    %v122 = vld [vmem:[#allocation5 + $0x40] sm:$0xff]
    %v123 = vld [vmem:[#allocation5 + $0x48] sm:$0xff]
    %v124 = vld [vmem:[#allocation5 + $0x50] sm:$0xff]
    %v125 = vld [vmem:[#allocation5 + $0x58] sm:$0xff]
    %v126 = vld [vmem:[%s2] sm:$0x3]
    %v128 = vlaneseq
    %v129 = vshrl.u32 %v128, 7
    %v130 = vsub.s32 0, %v129
    %v131 = vrot.slane %v126, %v130
    %v132 = vlaneseq
    %v133 = vshrl.u32 %v132, 7
    %v134 = vsub.s32 1, %v133
    %v135 = vrot.slane %v126, %v134
    %vm138 = vcmask 392192
    %v140 = vsel %vm138, %v82, 0
    %v143 = vsel %vm138, %v83, 0
    %v146 = vsel %vm138, %v84, 0
    %v149 = vsel %vm138, %v85, 0
    %v152 = vsel %vm138, %v86, 0
    %v155 = vsel %vm138, %v87, 0
    %v158 = vsel %vm138, %v88, 0
    %v161 = vsel %vm138, %v89, 0
    %v164 = vsel %vm138, %v90, 0
    %v167 = vsel %vm138, %v91, 0
    %v170 = vsel %vm138, %v92, 0
    %v173 = vsel %vm138, %v93, 0
    %v176 = vsel %vm138, %v94, 0
    %v179 = vsel %vm138, %v95, 0
    %v182 = vsel %vm138, %v96, 0
    %v185 = vsel %vm138, %v97, 0
    %v188 = vsel %vm138, %v98, 0
    %v191 = vsel %vm138, %v99, 0
    %v194 = vsel %vm138, %v100, 0
    %v197 = vsel %vm138, %v101, 0
    %v200 = vsel %vm138, %v102, 0
    %v203 = vsel %vm138, %v103, 0
    %v206 = vsel %vm138, %v104, 0
    %v209 = vsel %vm138, %v105, 0
    %v212 = vsel %vm138, %v106, 0
    %v215 = vsel %vm138, %v107, 0
    %v218 = vsel %vm138, %v108, 0
    %v221 = vsel %vm138, %v109, 0
    %v224 = vsel %vm138, %v110, 0
    %v227 = vsel %vm138, %v111, 0
    %v230 = vsel %vm138, %v112, 0
    %v233 = vsel %vm138, %v113, 0
    %235 = vmatprep.subr.mxu0 %v115
    %236 = vmatpush1.msra.mxu0 %v114
    %237 = vmatprep.subr.mxu0 %v117
    %238 = vmatpush1.msra.mxu0 %v116
    %239 = vmatprep.subr.mxu0 %v119
    %240 = vmatpush1.msra.mxu0 %v118
    %241 = vmatprep.subr.mxu0 %v121
    %242 = vmatpush1.msra.mxu0 %v120
    %243 = vmatprep.subr.mxu0 %v123
    %244 = vmatpush1.msra.mxu0 %v122
    %245 = vmatprep.subr.mxu0 %v125
    %246 = vmatpush1.msra.mxu0 %v124
    %247 = vmatprep.subr.mxu0 0.0
    %248 = vmatpush1.msra.mxu0 0.0
    %249 = vmatprep.subr.mxu0 0.0
    %250 = vmatpush1.msra.mxu0 0.0
    %251 = vmatprep.subr.mxu0 0.0
    %252 = vmatpush1.msra.mxu0 0.0
    %253 = vmatprep.subr.mxu0 0.0
    %254 = vmatpush1.msra.mxu0 0.0
    %255 = vmatprep.subr.mxu0 0.0
    %256 = vmatpush1.msra.mxu0 0.0
    %257 = vmatprep.subr.mxu0 0.0
    %258 = vmatpush1.msra.mxu0 0.0
    %259 = vmatprep.subr.mxu0 0.0
    %260 = vmatpush1.msra.mxu0 0.0
    %261 = vmatprep.subr.mxu0 0.0
    %262 = vmatpush1.msra.mxu0 0.0
    %263 = vmatprep.subr.mxu0 0.0
    %264 = vmatpush1.msra.mxu0 0.0
    %265 = vmatprep.subr.mxu0 0.0
    %266 = vmatpush1.msra.mxu0 0.0
    %267 = vmatprep.subr.mxu0 0.0
    %268 = vmatpush1.msra.mxu0 0.0
    %269 = vmatprep.subr.mxu0 0.0
    %270 = vmatpush1.msra.mxu0 0.0
    %271 = vmatprep.subr.mxu0 0.0
    %272 = vmatpush1.msra.mxu0 0.0
    %273 = vmatprep.subr.mxu0 0.0
    %274 = vmatpush1.msra.mxu0 0.0
    %275 = vmatprep.subr.mxu0 0.0
    %276 = vmatpush1.msra.mxu0 0.0
    %277 = vmatprep.subr.mxu0 0.0
    %278 = vmatpush1.msra.mxu0 0.0
    %279 = vmatprep.subr.mxu0 0.0
    %280 = vmatpush1.msra.mxu0 0.0
    %281 = vmatprep.subr.mxu0 0.0
    %282 = vmatpush1.msra.mxu0 0.0
    %283 = vmatprep.subr.mxu0 0.0
    %284 = vmatpush1.msra.mxu0 0.0
    %285 = vmatprep.subr.mxu0 0.0
    %286 = vmatpush1.msra.mxu0 0.0
    %287 = vmatprep.subr.mxu0 0.0
    %288 = vmatpush1.msra.mxu0 0.0
    %289 = vmatprep.subr.mxu0 0.0
    %290 = vmatpush1.msra.mxu0 0.0
    %291 = vmatprep.subr.mxu0 0.0
    %292 = vmatpush1.msra.mxu0 0.0
    %293 = vmatprep.subr.mxu0 0.0
    %294 = vmatpush1.msra.mxu0 0.0
    %295 = vmatprep.subr.mxu0 0.0
    %296 = vmatpush1.msra.mxu0 0.0
    %297 = vmatprep.subr.mxu0 0.0
    %298 = vmatpush1.msra.mxu0 0.0
    %299 = vmatprep.mubr.f32.mxu0 0.0
    %300 = vmatmul.mubr.f32.gmra.mrb[0].mxu0 %v140
    %v301 = vpop.f32.mrb[0].mxu0
    %v302 = vadd.f32 %v131, %v301
    %v303 = vpop.f32.mrb[0].mxu0
    %v304 = vadd.f32 %v135, %v303
    %305 = vmatprep.mubr.f32.mxu0 0.0
    %306 = vmatmul.mubr.f32.gmra.mrb[0].mxu0 %v143
    %v307 = vpop.f32.mrb[0].mxu0
    %v308 = vadd.f32 %v131, %v307
    %v309 = vpop.f32.mrb[0].mxu0
    %v310 = vadd.f32 %v135, %v309
    %311 = vmatprep.mubr.f32.mxu0 0.0
    %312 = vmatmul.mubr.f32.gmra.mrb[0].mxu0 %v146
    %v313 = vpop.f32.mrb[0].mxu0
    %v314 = vadd.f32 %v131, %v313
    %v315 = vpop.f32.mrb[0].mxu0
    %v316 = vadd.f32 %v135, %v315
    %317 = vmatprep.mubr.f32.mxu0 0.0
    %318 = vmatmul.mubr.f32.gmra.mrb[0].mxu0 %v149
    %v319 = vpop.f32.mrb[0].mxu0
    %v320 = vadd.f32 %v131, %v319
    %v321 = vpop.f32.mrb[0].mxu0
    %v322 = vadd.f32 %v135, %v321
    %323 = vmatprep.mubr.f32.mxu0 0.0
    %324 = vmatmul.mubr.f32.gmra.mrb[0].mxu0 %v152
    %v325 = vpop.f32.mrb[0].mxu0
    %v326 = vadd.f32 %v131, %v325
    %v327 = vpop.f32.mrb[0].mxu0
    %v328 = vadd.f32 %v135, %v327
    %329 = vmatprep.mubr.f32.mxu0 0.0
    %330 = vmatmul.mubr.f32.gmra.mrb[0].mxu0 %v155
    %v331 = vpop.f32.mrb[0].mxu0
    %v332 = vadd.f32 %v131, %v331
    %v333 = vpop.f32.mrb[0].mxu0
    %v334 = vadd.f32 %v135, %v333
    %335 = vmatprep.mubr.f32.mxu0 0.0
    %336 = vmatmul.mubr.f32.gmra.mrb[0].mxu0 %v158
    %v337 = vpop.f32.mrb[0].mxu0
    %v338 = vadd.f32 %v131, %v337
    %v339 = vpop.f32.mrb[0].mxu0
    %v340 = vadd.f32 %v135, %v339
    %341 = vmatprep.mubr.f32.mxu0 0.0
    %342 = vmatmul.mubr.f32.gmra.mrb[0].mxu0 %v161
    %v343 = vpop.f32.mrb[0].mxu0
    %v344 = vadd.f32 %v131, %v343
    %v345 = vpop.f32.mrb[0].mxu0
    %v346 = vadd.f32 %v135, %v345
    %347 = vmatprep.mubr.f32.mxu0 0.0
    %348 = vmatmul.mubr.f32.gmra.mrb[0].mxu0 %v164
    %v349 = vpop.f32.mrb[0].mxu0
    %v350 = vadd.f32 %v131, %v349
    %v351 = vpop.f32.mrb[0].mxu0
    %v352 = vadd.f32 %v135, %v351
    %353 = vmatprep.mubr.f32.mxu0 0.0
    %354 = vmatmul.mubr.f32.gmra.mrb[0].mxu0 %v167
    %v355 = vpop.f32.mrb[0].mxu0
    %v356 = vadd.f32 %v131, %v355
    %v357 = vpop.f32.mrb[0].mxu0
    %v358 = vadd.f32 %v135, %v357
    %359 = vmatprep.mubr.f32.mxu0 0.0
    %360 = vmatmul.mubr.f32.gmra.mrb[0].mxu0 %v170
    %v361 = vpop.f32.mrb[0].mxu0
    %v362 = vadd.f32 %v131, %v361
    %v363 = vpop.f32.mrb[0].mxu0
    %v364 = vadd.f32 %v135, %v363
    %365 = vmatprep.mubr.f32.mxu0 0.0
    %366 = vmatmul.mubr.f32.gmra.mrb[0].mxu0 %v173
    %v367 = vpop.f32.mrb[0].mxu0
    %v368 = vadd.f32 %v131, %v367
    %v369 = vpop.f32.mrb[0].mxu0
    %v370 = vadd.f32 %v135, %v369
    %371 = vmatprep.mubr.f32.mxu0 0.0
    %372 = vmatmul.mubr.f32.gmra.mrb[0].mxu0 %v176
    %v373 = vpop.f32.mrb[0].mxu0
    %v374 = vadd.f32 %v131, %v373
    %v375 = vpop.f32.mrb[0].mxu0
    %v376 = vadd.f32 %v135, %v375
    %377 = vmatprep.mubr.f32.mxu0 0.0
    %378 = vmatmul.mubr.f32.gmra.mrb[0].mxu0 %v179
    %v379 = vpop.f32.mrb[0].mxu0
    %v380 = vadd.f32 %v131, %v379
    %v381 = vpop.f32.mrb[0].mxu0
    %v382 = vadd.f32 %v135, %v381
    %383 = vmatprep.mubr.f32.mxu0 0.0
    %384 = vmatmul.mubr.f32.gmra.mrb[0].mxu0 %v182
    %v385 = vpop.f32.mrb[0].mxu0
    %v386 = vadd.f32 %v131, %v385
    %v387 = vpop.f32.mrb[0].mxu0
    %v388 = vadd.f32 %v135, %v387
    %389 = vmatprep.mubr.f32.mxu0 0.0
    %390 = vmatmul.mubr.f32.gmra.mrb[0].mxu0 %v185
    %v391 = vpop.f32.mrb[0].mxu0
    %v392 = vadd.f32 %v131, %v391
    %v393 = vpop.f32.mrb[0].mxu0
    %v394 = vadd.f32 %v135, %v393
    %395 = vmatprep.mubr.f32.mxu0 0.0
    %396 = vmatmul.mubr.f32.gmra.mrb[0].mxu0 %v188
    %v397 = vpop.f32.mrb[0].mxu0
    %v398 = vadd.f32 %v131, %v397
    %v399 = vpop.f32.mrb[0].mxu0
    %v400 = vadd.f32 %v135, %v399
    %401 = vmatprep.mubr.f32.mxu0 0.0
    %402 = vmatmul.mubr.f32.gmra.mrb[0].mxu0 %v191
    %v403 = vpop.f32.mrb[0].mxu0
    %v404 = vadd.f32 %v131, %v403
    %v405 = vpop.f32.mrb[0].mxu0
    %v406 = vadd.f32 %v135, %v405
    %407 = vmatprep.mubr.f32.mxu0 0.0
    %408 = vmatmul.mubr.f32.gmra.mrb[0].mxu0 %v194
    %v409 = vpop.f32.mrb[0].mxu0
    %v410 = vadd.f32 %v131, %v409
    %v411 = vpop.f32.mrb[0].mxu0
    %v412 = vadd.f32 %v135, %v411
    %413 = vmatprep.mubr.f32.mxu0 0.0
    %414 = vmatmul.mubr.f32.gmra.mrb[0].mxu0 %v197
    %v415 = vpop.f32.mrb[0].mxu0
    %v416 = vadd.f32 %v131, %v415
    %v417 = vpop.f32.mrb[0].mxu0
    %v418 = vadd.f32 %v135, %v417
    %419 = vmatprep.mubr.f32.mxu0 0.0
    %420 = vmatmul.mubr.f32.gmra.mrb[0].mxu0 %v200
    %v421 = vpop.f32.mrb[0].mxu0
    %v422 = vadd.f32 %v131, %v421
    %v423 = vpop.f32.mrb[0].mxu0
    %v424 = vadd.f32 %v135, %v423
    %425 = vmatprep.mubr.f32.mxu0 0.0
    %426 = vmatmul.mubr.f32.gmra.mrb[0].mxu0 %v203
    %v427 = vpop.f32.mrb[0].mxu0
    %v428 = vadd.f32 %v131, %v427
    %v429 = vpop.f32.mrb[0].mxu0
    %v430 = vadd.f32 %v135, %v429
    %431 = vmatprep.mubr.f32.mxu0 0.0
    %432 = vmatmul.mubr.f32.gmra.mrb[0].mxu0 %v206
    %v433 = vpop.f32.mrb[0].mxu0
    %v434 = vadd.f32 %v131, %v433
    %v435 = vpop.f32.mrb[0].mxu0
    %v436 = vadd.f32 %v135, %v435
    %437 = vmatprep.mubr.f32.mxu0 0.0
    %438 = vmatmul.mubr.f32.gmra.mrb[0].mxu0 %v209
    %v439 = vpop.f32.mrb[0].mxu0
    %v440 = vadd.f32 %v131, %v439
    %v441 = vpop.f32.mrb[0].mxu0
    %v442 = vadd.f32 %v135, %v441
    %443 = vmatprep.mubr.f32.mxu0 0.0
    %444 = vmatmul.mubr.f32.gmra.mrb[0].mxu0 %v212
    %v445 = vpop.f32.mrb[0].mxu0
    %v446 = vadd.f32 %v131, %v445
    %v447 = vpop.f32.mrb[0].mxu0
    %v448 = vadd.f32 %v135, %v447
    %449 = vmatprep.mubr.f32.mxu0 0.0
    %450 = vmatmul.mubr.f32.gmra.mrb[0].mxu0 %v215
    %v451 = vpop.f32.mrb[0].mxu0
    %v452 = vadd.f32 %v131, %v451
    %v453 = vpop.f32.mrb[0].mxu0
    %v454 = vadd.f32 %v135, %v453
    %455 = vmatprep.mubr.f32.mxu0 0.0
    %456 = vmatmul.mubr.f32.gmra.mrb[0].mxu0 %v218
    %v457 = vpop.f32.mrb[0].mxu0
    %v458 = vadd.f32 %v131, %v457
    %v459 = vpop.f32.mrb[0].mxu0
    %v460 = vadd.f32 %v135, %v459
    %461 = vmatprep.mubr.f32.mxu0 0.0
    %462 = vmatmul.mubr.f32.gmra.mrb[0].mxu0 %v221
    %v463 = vpop.f32.mrb[0].mxu0
    %v464 = vadd.f32 %v131, %v463
    %v465 = vpop.f32.mrb[0].mxu0
    %v466 = vadd.f32 %v135, %v465
    %467 = vmatprep.mubr.f32.mxu0 0.0
    %468 = vmatmul.mubr.f32.gmra.mrb[0].mxu0 %v224
    %v469 = vpop.f32.mrb[0].mxu0
    %v470 = vadd.f32 %v131, %v469
    %v471 = vpop.f32.mrb[0].mxu0
    %v472 = vadd.f32 %v135, %v471
    %473 = vmatprep.mubr.f32.mxu0 0.0
    %474 = vmatmul.mubr.f32.gmra.mrb[0].mxu0 %v227
    %v475 = vpop.f32.mrb[0].mxu0
    %v476 = vadd.f32 %v131, %v475
    %v477 = vpop.f32.mrb[0].mxu0
    %v478 = vadd.f32 %v135, %v477
    %479 = vmatprep.mubr.f32.mxu0 0.0
    %480 = vmatmul.mubr.f32.gmra.mrb[0].mxu0 %v230
    %v481 = vpop.f32.mrb[0].mxu0
    %v482 = vadd.f32 %v131, %v481
    %v483 = vpop.f32.mrb[0].mxu0
    %v484 = vadd.f32 %v135, %v483
    %485 = vmatprep.mubr.f32.mxu0 0.0
    %486 = vmatmul.mubr.f32.gmra.mrb[0].mxu0 %v233
    %v487 = vpop.f32.mrb[0].mxu0
    %v488 = vadd.f32 %v131, %v487
    %v489 = vpop.f32.mrb[0].mxu0
    %v490 = vadd.f32 %v135, %v489
    %491 = vdwg.mxu0
    %v492 = vtanh.pop %v302
    %v493 = vtanh.pop %v304
    %v494 = vtanh.pop %v308
    %v495 = vtanh.pop %v310
    %v496 = vtanh.pop %v314
    %v497 = vtanh.pop %v316
    %v498 = vtanh.pop %v320
    %v499 = vtanh.pop %v322
    %v500 = vtanh.pop %v326
    %v501 = vtanh.pop %v328
    %v502 = vtanh.pop %v332
    %v503 = vtanh.pop %v334
    %v504 = vtanh.pop %v338
    %v505 = vtanh.pop %v340
    %v506 = vtanh.pop %v344
    %v507 = vtanh.pop %v346
    %v508 = vtanh.pop %v350
    %v509 = vtanh.pop %v352
    %v510 = vtanh.pop %v356
    %v511 = vtanh.pop %v358
    %v512 = vtanh.pop %v362
    %v513 = vtanh.pop %v364
    %v514 = vtanh.pop %v368
    %v515 = vtanh.pop %v370
    %v516 = vtanh.pop %v374
    %v517 = vtanh.pop %v376
    %v518 = vtanh.pop %v380
    %v519 = vtanh.pop %v382
    %v520 = vtanh.pop %v386
    %v521 = vtanh.pop %v388
    %v522 = vtanh.pop %v392
    %v523 = vtanh.pop %v394
    %v524 = vtanh.pop %v398
    %v525 = vtanh.pop %v400
    %v526 = vtanh.pop %v404
    %v527 = vtanh.pop %v406
    %v528 = vtanh.pop %v410
    %v529 = vtanh.pop %v412
    %v530 = vtanh.pop %v416
    %v531 = vtanh.pop %v418
    %v532 = vtanh.pop %v422
    %v533 = vtanh.pop %v424
    %v534 = vtanh.pop %v428
    %v535 = vtanh.pop %v430
    %v536 = vtanh.pop %v434
    %v537 = vtanh.pop %v436
    %v538 = vtanh.pop %v440
    %v539 = vtanh.pop %v442
    %v540 = vtanh.pop %v446
    %v541 = vtanh.pop %v448
    %v542 = vtanh.pop %v452
    %v543 = vtanh.pop %v454
    %v544 = vtanh.pop %v458
    %v545 = vtanh.pop %v460
    %v546 = vtanh.pop %v464
    %v547 = vtanh.pop %v466
    %v548 = vtanh.pop %v470
    %v549 = vtanh.pop %v472
    %v550 = vtanh.pop %v476
    %v551 = vtanh.pop %v478
    %v552 = vtanh.pop %v482
    %v553 = vtanh.pop %v484
    %v554 = vtanh.pop %v488
    %v555 = vtanh.pop %v490
    %v556 = vld [vmem:[#allocation7] sm:$0xff]
    %v557 = vld [vmem:[#allocation7 + $0x8] sm:$0xff]
    %v558 = vld [vmem:[#allocation7 + $0x10] sm:$0xff]
    %v559 = vld [vmem:[#allocation7 + $0x18] sm:$0xff]
    %v560 = vld [vmem:[#allocation7 + $0x20] sm:$0xff]
    %v561 = vld [vmem:[#allocation7 + $0x28] sm:$0xff]
    %v562 = vld [vmem:[#allocation7 + $0x30] sm:$0xff]
    %v563 = vld [vmem:[#allocation7 + $0x38] sm:$0xff]
    %v564 = vld [vmem:[#allocation7 + $0x40] sm:$0xff]
    %v565 = vld [vmem:[#allocation7 + $0x48] sm:$0xff]
    %v566 = vld [vmem:[#allocation7 + $0x50] sm:$0xff]
    %v567 = vld [vmem:[#allocation7 + $0x58] sm:$0xff]
    %v568 = vld [vmem:[#allocation7 + $0x60] sm:$0xff]
    %v569 = vld [vmem:[#allocation7 + $0x68] sm:$0xff]
    %v570 = vld [vmem:[#allocation7 + $0x70] sm:$0xff]
    %v571 = vld [vmem:[#allocation7 + $0x78] sm:$0xff]
    %v572 = vld [vmem:[#allocation7 + $0x80] sm:$0xff]
    %v573 = vld [vmem:[#allocation7 + $0x88] sm:$0xff]
    %v574 = vld [vmem:[#allocation7 + $0x90] sm:$0xff]
    %v575 = vld [vmem:[#allocation7 + $0x98] sm:$0xff]
    %v576 = vld [vmem:[#allocation7 + $0xa0] sm:$0xff]
    %v577 = vld [vmem:[#allocation7 + $0xa8] sm:$0xff]
    %v578 = vld [vmem:[#allocation7 + $0xb0] sm:$0xff]
    %v579 = vld [vmem:[#allocation7 + $0xb8] sm:$0xff]
    %v580 = vld [vmem:[#allocation7 + $0xc0] sm:$0xff]
    %v581 = vld [vmem:[#allocation7 + $0xc8] sm:$0xff]
    %v582 = vld [vmem:[#allocation7 + $0xd0] sm:$0xff]
    %v583 = vld [vmem:[#allocation7 + $0xd8] sm:$0xff]
    %v584 = vld [vmem:[#allocation7 + $0xe0] sm:$0xff]
    %v585 = vld [vmem:[#allocation7 + $0xe8] sm:$0xff]
    %v586 = vld [vmem:[#allocation7 + $0xf0] sm:$0xff]
    %v587 = vld [vmem:[#allocation7 + $0xf8] sm:$0xff]
    %v588 = vld [vmem:[#allocation7 + $0x100] sm:$0xff]
    %v589 = vld [vmem:[#allocation7 + $0x108] sm:$0xff]
    %v590 = vld [vmem:[#allocation7 + $0x110] sm:$0xff]
    %v591 = vld [vmem:[#allocation7 + $0x118] sm:$0xff]
    %v592 = vld [vmem:[#allocation7 + $0x120] sm:$0xff]
    %v593 = vld [vmem:[#allocation7 + $0x128] sm:$0xff]
    %v594 = vld [vmem:[#allocation7 + $0x130] sm:$0xff]
    %v595 = vld [vmem:[#allocation7 + $0x138] sm:$0xff]
    %v596 = vld [vmem:[#allocation7 + $0x140] sm:$0xff]
    %v597 = vld [vmem:[#allocation7 + $0x148] sm:$0xff]
    %v598 = vld [vmem:[#allocation7 + $0x150] sm:$0xff]
    %v599 = vld [vmem:[#allocation7 + $0x158] sm:$0xff]
    %v600 = vld [vmem:[#allocation7 + $0x160] sm:$0xff]
    %v601 = vld [vmem:[#allocation7 + $0x168] sm:$0xff]
    %v602 = vld [vmem:[#allocation7 + $0x170] sm:$0xff]
    %v603 = vld [vmem:[#allocation7 + $0x178] sm:$0xff]
    %v604 = vld [vmem:[#allocation7 + $0x180] sm:$0xff]
    %v605 = vld [vmem:[#allocation7 + $0x188] sm:$0xff]
    %v606 = vld [vmem:[#allocation7 + $0x190] sm:$0xff]
    %v607 = vld [vmem:[#allocation7 + $0x198] sm:$0xff]
    %v608 = vld [vmem:[#allocation7 + $0x1a0] sm:$0xff]
    %v609 = vld [vmem:[#allocation7 + $0x1a8] sm:$0xff]
    %v610 = vld [vmem:[#allocation7 + $0x1b0] sm:$0xff]
    %v611 = vld [vmem:[#allocation7 + $0x1b8] sm:$0xff]
    %v612 = vld [vmem:[#allocation7 + $0x1c0] sm:$0xff]
    %v613 = vld [vmem:[#allocation7 + $0x1c8] sm:$0xff]
    %v614 = vld [vmem:[#allocation7 + $0x1d0] sm:$0xff]
    %v615 = vld [vmem:[#allocation7 + $0x1d8] sm:$0xff]
    %v616 = vld [vmem:[#allocation7 + $0x1e0] sm:$0xff]
    %v617 = vld [vmem:[#allocation7 + $0x1e8] sm:$0xff]
    %v618 = vld [vmem:[#allocation7 + $0x1f0] sm:$0xff]
    %v619 = vld [vmem:[#allocation7 + $0x1f8] sm:$0xff]
    %v620 = vld [vmem:[%s4] sm:$0x3]
    %v622 = vlaneseq
    %v623 = vshrl.u32 %v622, 7
    %v624 = vsub.s32 0, %v623
    %v625 = vrot.slane %v620, %v624
    %v626 = vlaneseq
    %v627 = vshrl.u32 %v626, 7
    %v628 = vsub.s32 1, %v627
    %v629 = vrot.slane %v620, %v628
    %632 = vmatprep.subr.mxu0 %v557
    %633 = vmatpush1.msra.mxu0 %v556
    %634 = vmatprep.subr.mxu0 %v559
    %635 = vmatpush1.msra.mxu0 %v558
    %636 = vmatprep.subr.mxu0 %v561
    %637 = vmatpush1.msra.mxu0 %v560
    %638 = vmatprep.subr.mxu0 %v563
    %639 = vmatpush1.msra.mxu0 %v562
    %640 = vmatprep.subr.mxu0 %v565
    %641 = vmatpush1.msra.mxu0 %v564
    %642 = vmatprep.subr.mxu0 %v567
    %643 = vmatpush1.msra.mxu0 %v566
    %644 = vmatprep.subr.mxu0 %v569
    %645 = vmatpush1.msra.mxu0 %v568
    %646 = vmatprep.subr.mxu0 %v571
    %647 = vmatpush1.msra.mxu0 %v570
    %648 = vmatprep.subr.mxu0 %v573
    %649 = vmatpush1.msra.mxu0 %v572
    %650 = vmatprep.subr.mxu0 %v575
    %651 = vmatpush1.msra.mxu0 %v574
    %652 = vmatprep.subr.mxu0 %v577
    %653 = vmatpush1.msra.mxu0 %v576
    %654 = vmatprep.subr.mxu0 %v579
    %655 = vmatpush1.msra.mxu0 %v578
    %656 = vmatprep.subr.mxu0 %v581
    %657 = vmatpush1.msra.mxu0 %v580
    %658 = vmatprep.subr.mxu0 %v583
    %659 = vmatpush1.msra.mxu0 %v582
    %660 = vmatprep.subr.mxu0 %v585
    %661 = vmatpush1.msra.mxu0 %v584
    %662 = vmatprep.subr.mxu0 %v587
    %663 = vmatpush1.msra.mxu0 %v586
    %664 = vmatprep.subr.mxu0 %v589
    %665 = vmatpush1.msra.mxu0 %v588
    %666 = vmatprep.subr.mxu0 %v591
    %667 = vmatpush1.msra.mxu0 %v590
    %668 = vmatprep.subr.mxu0 %v593
    %669 = vmatpush1.msra.mxu0 %v592
    %670 = vmatprep.subr.mxu0 %v595
    %671 = vmatpush1.msra.mxu0 %v594
    %672 = vmatprep.subr.mxu0 %v597
    %673 = vmatpush1.msra.mxu0 %v596
    %674 = vmatprep.subr.mxu0 %v599
    %675 = vmatpush1.msra.mxu0 %v598
    %676 = vmatprep.subr.mxu0 %v601
    %677 = vmatpush1.msra.mxu0 %v600
    %678 = vmatprep.subr.mxu0 %v603
    %679 = vmatpush1.msra.mxu0 %v602
    %680 = vmatprep.subr.mxu0 %v605
    %681 = vmatpush1.msra.mxu0 %v604
    %682 = vmatprep.subr.mxu0 %v607
    %683 = vmatpush1.msra.mxu0 %v606
    %684 = vmatprep.subr.mxu0 %v609
    %685 = vmatpush1.msra.mxu0 %v608
    %686 = vmatprep.subr.mxu0 %v611
    %687 = vmatpush1.msra.mxu0 %v610
    %688 = vmatprep.subr.mxu0 %v613
    %689 = vmatpush1.msra.mxu0 %v612
    %690 = vmatprep.subr.mxu0 %v615
    %691 = vmatpush1.msra.mxu0 %v614
    %692 = vmatprep.subr.mxu0 %v617
    %693 = vmatpush1.msra.mxu0 %v616
    %694 = vmatprep.subr.mxu0 %v619
    %695 = vmatpush1.msra.mxu0 %v618
    %696 = vmatprep.mubr.f32.mxu0 %v493
    %697 = vmatmul.mubr.f32.gmra.mrb[0].mxu0 %v492
    %v698 = vpop.f32.mrb[0].mxu0
    %v699 = vadd.f32 %v625, %v698
    %v700 = vpop.f32.mrb[0].mxu0
    %v701 = vadd.f32 %v629, %v700
    %702 = vmatprep.mubr.f32.mxu0 %v495
    %703 = vmatmul.mubr.f32.gmra.mrb[0].mxu0 %v494
    %v704 = vpop.f32.mrb[0].mxu0
    %v705 = vadd.f32 %v625, %v704
    %v706 = vpop.f32.mrb[0].mxu0
    %v707 = vadd.f32 %v629, %v706
    %708 = vmatprep.mubr.f32.mxu0 %v497
    %709 = vmatmul.mubr.f32.gmra.mrb[0].mxu0 %v496
    %v710 = vpop.f32.mrb[0].mxu0
    %v711 = vadd.f32 %v625, %v710
    %v712 = vpop.f32.mrb[0].mxu0
    %v713 = vadd.f32 %v629, %v712
    %714 = vmatprep.mubr.f32.mxu0 %v499
    %715 = vmatmul.mubr.f32.gmra.mrb[0].mxu0 %v498
    %v716 = vpop.f32.mrb[0].mxu0
    %v717 = vadd.f32 %v625, %v716
    %v718 = vpop.f32.mrb[0].mxu0
    %v719 = vadd.f32 %v629, %v718
    %720 = vmatprep.mubr.f32.mxu0 %v501
    %721 = vmatmul.mubr.f32.gmra.mrb[0].mxu0 %v500
    %v722 = vpop.f32.mrb[0].mxu0
    %v723 = vadd.f32 %v625, %v722
    %v724 = vpop.f32.mrb[0].mxu0
    %v725 = vadd.f32 %v629, %v724
    %726 = vmatprep.mubr.f32.mxu0 %v503
    %727 = vmatmul.mubr.f32.gmra.mrb[0].mxu0 %v502
    %v728 = vpop.f32.mrb[0].mxu0
    %v729 = vadd.f32 %v625, %v728
    %v730 = vpop.f32.mrb[0].mxu0
    %v731 = vadd.f32 %v629, %v730
    %732 = vmatprep.mubr.f32.mxu0 %v505
    %733 = vmatmul.mubr.f32.gmra.mrb[0].mxu0 %v504
    %v734 = vpop.f32.mrb[0].mxu0
    %v735 = vadd.f32 %v625, %v734
    %v736 = vpop.f32.mrb[0].mxu0
    %v737 = vadd.f32 %v629, %v736
    %738 = vmatprep.mubr.f32.mxu0 %v507
    %739 = vmatmul.mubr.f32.gmra.mrb[0].mxu0 %v506
    %v740 = vpop.f32.mrb[0].mxu0
    %v741 = vadd.f32 %v625, %v740
    %v742 = vpop.f32.mrb[0].mxu0
    %v743 = vadd.f32 %v629, %v742
    %744 = vmatprep.mubr.f32.mxu0 %v509
    %745 = vmatmul.mubr.f32.gmra.mrb[0].mxu0 %v508
    %v746 = vpop.f32.mrb[0].mxu0
    %v747 = vadd.f32 %v625, %v746
    %v748 = vpop.f32.mrb[0].mxu0
    %v749 = vadd.f32 %v629, %v748
    %750 = vmatprep.mubr.f32.mxu0 %v511
    %751 = vmatmul.mubr.f32.gmra.mrb[0].mxu0 %v510
    %v752 = vpop.f32.mrb[0].mxu0
    %v753 = vadd.f32 %v625, %v752
    %v754 = vpop.f32.mrb[0].mxu0
    %v755 = vadd.f32 %v629, %v754
    %756 = vmatprep.mubr.f32.mxu0 %v513
    %757 = vmatmul.mubr.f32.gmra.mrb[0].mxu0 %v512
    %v758 = vpop.f32.mrb[0].mxu0
    %v759 = vadd.f32 %v625, %v758
    %v760 = vpop.f32.mrb[0].mxu0
    %v761 = vadd.f32 %v629, %v760
    %762 = vmatprep.mubr.f32.mxu0 %v515
    %763 = vmatmul.mubr.f32.gmra.mrb[0].mxu0 %v514
    %v764 = vpop.f32.mrb[0].mxu0
    %v765 = vadd.f32 %v625, %v764
    %v766 = vpop.f32.mrb[0].mxu0
    %v767 = vadd.f32 %v629, %v766
    %768 = vmatprep.mubr.f32.mxu0 %v517
    %769 = vmatmul.mubr.f32.gmra.mrb[0].mxu0 %v516
    %v770 = vpop.f32.mrb[0].mxu0
    %v771 = vadd.f32 %v625, %v770
    %v772 = vpop.f32.mrb[0].mxu0
    %v773 = vadd.f32 %v629, %v772
    %774 = vmatprep.mubr.f32.mxu0 %v519
    %775 = vmatmul.mubr.f32.gmra.mrb[0].mxu0 %v518
    %v776 = vpop.f32.mrb[0].mxu0
    %v777 = vadd.f32 %v625, %v776
    %v778 = vpop.f32.mrb[0].mxu0
    %v779 = vadd.f32 %v629, %v778
    %780 = vmatprep.mubr.f32.mxu0 %v521
    %781 = vmatmul.mubr.f32.gmra.mrb[0].mxu0 %v520
    %v782 = vpop.f32.mrb[0].mxu0
    %v783 = vadd.f32 %v625, %v782
    %v784 = vpop.f32.mrb[0].mxu0
    %v785 = vadd.f32 %v629, %v784
    %786 = vmatprep.mubr.f32.mxu0 %v523
    %787 = vmatmul.mubr.f32.gmra.mrb[0].mxu0 %v522
    %v788 = vpop.f32.mrb[0].mxu0
    %v789 = vadd.f32 %v625, %v788
    %v790 = vpop.f32.mrb[0].mxu0
    %v791 = vadd.f32 %v629, %v790
    %792 = vmatprep.mubr.f32.mxu0 %v525
    %793 = vmatmul.mubr.f32.gmra.mrb[0].mxu0 %v524
    %v794 = vpop.f32.mrb[0].mxu0
    %v795 = vadd.f32 %v625, %v794
    %v796 = vpop.f32.mrb[0].mxu0
    %v797 = vadd.f32 %v629, %v796
    %798 = vmatprep.mubr.f32.mxu0 %v527
    %799 = vmatmul.mubr.f32.gmra.mrb[0].mxu0 %v526
    %v800 = vpop.f32.mrb[0].mxu0
    %v801 = vadd.f32 %v625, %v800
    %v802 = vpop.f32.mrb[0].mxu0
    %v803 = vadd.f32 %v629, %v802
    %804 = vmatprep.mubr.f32.mxu0 %v529
    %805 = vmatmul.mubr.f32.gmra.mrb[0].mxu0 %v528
    %v806 = vpop.f32.mrb[0].mxu0
    %v807 = vadd.f32 %v625, %v806
    %v808 = vpop.f32.mrb[0].mxu0
    %v809 = vadd.f32 %v629, %v808
    %810 = vmatprep.mubr.f32.mxu0 %v531
    %811 = vmatmul.mubr.f32.gmra.mrb[0].mxu0 %v530
    %v812 = vpop.f32.mrb[0].mxu0
    %v813 = vadd.f32 %v625, %v812
    %v814 = vpop.f32.mrb[0].mxu0
    %v815 = vadd.f32 %v629, %v814
    %816 = vmatprep.mubr.f32.mxu0 %v533
    %817 = vmatmul.mubr.f32.gmra.mrb[0].mxu0 %v532
    %v818 = vpop.f32.mrb[0].mxu0
    %v819 = vadd.f32 %v625, %v818
    %v820 = vpop.f32.mrb[0].mxu0
    %v821 = vadd.f32 %v629, %v820
    %822 = vmatprep.mubr.f32.mxu0 %v535
    %823 = vmatmul.mubr.f32.gmra.mrb[0].mxu0 %v534
    %v824 = vpop.f32.mrb[0].mxu0
    %v825 = vadd.f32 %v625, %v824
    %v826 = vpop.f32.mrb[0].mxu0
    %v827 = vadd.f32 %v629, %v826
    %828 = vmatprep.mubr.f32.mxu0 %v537
    %829 = vmatmul.mubr.f32.gmra.mrb[0].mxu0 %v536
    %v830 = vpop.f32.mrb[0].mxu0
    %v831 = vadd.f32 %v625, %v830
    %v832 = vpop.f32.mrb[0].mxu0
    %v833 = vadd.f32 %v629, %v832
    %834 = vmatprep.mubr.f32.mxu0 %v539
    %835 = vmatmul.mubr.f32.gmra.mrb[0].mxu0 %v538
    %v836 = vpop.f32.mrb[0].mxu0
    %v837 = vadd.f32 %v625, %v836
    %v838 = vpop.f32.mrb[0].mxu0
    %v839 = vadd.f32 %v629, %v838
    %840 = vmatprep.mubr.f32.mxu0 %v541
    %841 = vmatmul.mubr.f32.gmra.mrb[0].mxu0 %v540
    %v842 = vpop.f32.mrb[0].mxu0
    %v843 = vadd.f32 %v625, %v842
    %v844 = vpop.f32.mrb[0].mxu0
    %v845 = vadd.f32 %v629, %v844
    %846 = vmatprep.mubr.f32.mxu0 %v543
    %847 = vmatmul.mubr.f32.gmra.mrb[0].mxu0 %v542
    %v848 = vpop.f32.mrb[0].mxu0
    %v849 = vadd.f32 %v625, %v848
    %v850 = vpop.f32.mrb[0].mxu0
    %v851 = vadd.f32 %v629, %v850
    %852 = vmatprep.mubr.f32.mxu0 %v545
    %853 = vmatmul.mubr.f32.gmra.mrb[0].mxu0 %v544
    %v854 = vpop.f32.mrb[0].mxu0
    %v855 = vadd.f32 %v625, %v854
    %v856 = vpop.f32.mrb[0].mxu0
    %v857 = vadd.f32 %v629, %v856
    %858 = vmatprep.mubr.f32.mxu0 %v547
    %859 = vmatmul.mubr.f32.gmra.mrb[0].mxu0 %v546
    %v860 = vpop.f32.mrb[0].mxu0
    %v861 = vadd.f32 %v625, %v860
    %v862 = vpop.f32.mrb[0].mxu0
    %v863 = vadd.f32 %v629, %v862
    %864 = vmatprep.mubr.f32.mxu0 %v549
    %865 = vmatmul.mubr.f32.gmra.mrb[0].mxu0 %v548
    %v866 = vpop.f32.mrb[0].mxu0
    %v867 = vadd.f32 %v625, %v866
    %v868 = vpop.f32.mrb[0].mxu0
    %v869 = vadd.f32 %v629, %v868
    %870 = vmatprep.mubr.f32.mxu0 %v551
    %871 = vmatmul.mubr.f32.gmra.mrb[0].mxu0 %v550
    %v872 = vpop.f32.mrb[0].mxu0
    %v873 = vadd.f32 %v625, %v872
    %v874 = vpop.f32.mrb[0].mxu0
    %v875 = vadd.f32 %v629, %v874
    %876 = vmatprep.mubr.f32.mxu0 %v553
    %877 = vmatmul.mubr.f32.gmra.mrb[0].mxu0 %v552
    %v878 = vpop.f32.mrb[0].mxu0
    %v879 = vadd.f32 %v625, %v878
    %v880 = vpop.f32.mrb[0].mxu0
    %v881 = vadd.f32 %v629, %v880
    %882 = vmatprep.mubr.f32.mxu0 %v555
    %883 = vmatmul.mubr.f32.gmra.mrb[0].mxu0 %v554
    %v884 = vpop.f32.mrb[0].mxu0
    %v885 = vadd.f32 %v625, %v884
    %v886 = vpop.f32.mrb[0].mxu0
    %v887 = vadd.f32 %v629, %v886
    %888 = vdwg.mxu0
    %v889 = vtanh.pop %v699
    %v890 = vtanh.pop %v701
    %v891 = vtanh.pop %v705
    %v892 = vtanh.pop %v707
    %v893 = vtanh.pop %v711
    %v894 = vtanh.pop %v713
    %v895 = vtanh.pop %v717
    %v896 = vtanh.pop %v719
    %v897 = vtanh.pop %v723
    %v898 = vtanh.pop %v725
    %v899 = vtanh.pop %v729
    %v900 = vtanh.pop %v731
    %v901 = vtanh.pop %v735
    %v902 = vtanh.pop %v737
    %v903 = vtanh.pop %v741
    %v904 = vtanh.pop %v743
    %v905 = vtanh.pop %v747
    %v906 = vtanh.pop %v749
    %v907 = vtanh.pop %v753
    %v908 = vtanh.pop %v755
    %v909 = vtanh.pop %v759
    %v910 = vtanh.pop %v761
    %v911 = vtanh.pop %v765
    %v912 = vtanh.pop %v767
    %v913 = vtanh.pop %v771
    %v914 = vtanh.pop %v773
    %v915 = vtanh.pop %v777
    %v916 = vtanh.pop %v779
    %v917 = vtanh.pop %v783
    %v918 = vtanh.pop %v785
    %v919 = vtanh.pop %v789
    %v920 = vtanh.pop %v791
    %v921 = vtanh.pop %v795
    %v922 = vtanh.pop %v797
    %v923 = vtanh.pop %v801
    %v924 = vtanh.pop %v803
    %v925 = vtanh.pop %v807
    %v926 = vtanh.pop %v809
    %v927 = vtanh.pop %v813
    %v928 = vtanh.pop %v815
    %v929 = vtanh.pop %v819
    %v930 = vtanh.pop %v821
    %v931 = vtanh.pop %v825
    %v932 = vtanh.pop %v827
    %v933 = vtanh.pop %v831
    %v934 = vtanh.pop %v833
    %v935 = vtanh.pop %v837
    %v936 = vtanh.pop %v839
    %v937 = vtanh.pop %v843
    %v938 = vtanh.pop %v845
    %v939 = vtanh.pop %v849
    %v940 = vtanh.pop %v851
    %v941 = vtanh.pop %v855
    %v942 = vtanh.pop %v857
    %v943 = vtanh.pop %v861
    %v944 = vtanh.pop %v863
    %v945 = vtanh.pop %v867
    %v946 = vtanh.pop %v869
    %v947 = vtanh.pop %v873
    %v948 = vtanh.pop %v875
    %v949 = vtanh.pop %v879
    %v950 = vtanh.pop %v881
    %v951 = vtanh.pop %v885
    %v952 = vtanh.pop %v887
    %v953 = vld [vmem:[#allocation8] sm:$0xff]
    %v954 = vld [vmem:[#allocation8 + $0x8] sm:$0xff]
    %v955 = vld [vmem:[#allocation8 + $0x10] sm:$0xff]
    %v956 = vld [vmem:[#allocation8 + $0x18] sm:$0xff]
    %v957 = vld [vmem:[#allocation8 + $0x20] sm:$0xff]
    %v958 = vld [vmem:[#allocation8 + $0x28] sm:$0xff]
    %v959 = vld [vmem:[#allocation8 + $0x30] sm:$0xff]
    %v960 = vld [vmem:[#allocation8 + $0x38] sm:$0xff]
    %v961 = vld [vmem:[#allocation8 + $0x40] sm:$0xff]
    %v962 = vld [vmem:[#allocation8 + $0x48] sm:$0xff]
    %v963 = vld [vmem:[#allocation8 + $0x50] sm:$0xff]
    %v964 = vld [vmem:[#allocation8 + $0x58] sm:$0xff]
    %v965 = vld [vmem:[#allocation8 + $0x60] sm:$0xff]
    %v966 = vld [vmem:[#allocation8 + $0x68] sm:$0xff]
    %v967 = vld [vmem:[#allocation8 + $0x70] sm:$0xff]
    %v968 = vld [vmem:[#allocation8 + $0x78] sm:$0xff]
    %v969 = vld [vmem:[#allocation8 + $0x80] sm:$0xff]
    %v970 = vld [vmem:[#allocation8 + $0x88] sm:$0xff]
    %v971 = vld [vmem:[#allocation8 + $0x90] sm:$0xff]
    %v972 = vld [vmem:[#allocation8 + $0x98] sm:$0xff]
    %v973 = vld [vmem:[#allocation8 + $0xa0] sm:$0xff]
    %v974 = vld [vmem:[#allocation8 + $0xa8] sm:$0xff]
    %v975 = vld [vmem:[#allocation8 + $0xb0] sm:$0xff]
    %v976 = vld [vmem:[#allocation8 + $0xb8] sm:$0xff]
    %v977 = vld [vmem:[#allocation8 + $0xc0] sm:$0xff]
    %v978 = vld [vmem:[#allocation8 + $0xc8] sm:$0xff]
    %v979 = vld [vmem:[#allocation8 + $0xd0] sm:$0xff]
    %v980 = vld [vmem:[#allocation8 + $0xd8] sm:$0xff]
    %v981 = vld [vmem:[#allocation8 + $0xe0] sm:$0xff]
    %v982 = vld [vmem:[#allocation8 + $0xe8] sm:$0xff]
    %v983 = vld [vmem:[#allocation8 + $0xf0] sm:$0xff]
    %v984 = vld [vmem:[#allocation8 + $0xf8] sm:$0xff]
    %v985 = vld [vmem:[%s6] sm:$0x1]
    %v987 = vlaneseq
    %v988 = vshrl.u32 %v987, 7
    %v989 = vsub.s32 0, %v988
    %v990 = vrot.slane %v985, %v989
    %992 = vmatprep.subr.mxu0 0.0
    %993 = vmatpush1.msra.mxu0 %v953
    %994 = vmatprep.subr.mxu0 0.0
    %995 = vmatpush1.msra.mxu0 %v954
    %996 = vmatprep.subr.mxu0 0.0
    %997 = vmatpush1.msra.mxu0 %v955
    %998 = vmatprep.subr.mxu0 0.0
    %999 = vmatpush1.msra.mxu0 %v956
    %1000 = vmatprep.subr.mxu0 0.0
    %1001 = vmatpush1.msra.mxu0 %v957
    %1002 = vmatprep.subr.mxu0 0.0
    %1003 = vmatpush1.msra.mxu0 %v958
    %1004 = vmatprep.subr.mxu0 0.0
    %1005 = vmatpush1.msra.mxu0 %v959
    %1006 = vmatprep.subr.mxu0 0.0
    %1007 = vmatpush1.msra.mxu0 %v960
    %1008 = vmatprep.subr.mxu0 0.0
    %1009 = vmatpush1.msra.mxu0 %v961
    %1010 = vmatprep.subr.mxu0 0.0
    %1011 = vmatpush1.msra.mxu0 %v962
    %1012 = vmatprep.subr.mxu0 0.0
    %1013 = vmatpush1.msra.mxu0 %v963
    %1014 = vmatprep.subr.mxu0 0.0
    %1015 = vmatpush1.msra.mxu0 %v964
    %1016 = vmatprep.subr.mxu0 0.0
    %1017 = vmatpush1.msra.mxu0 %v965
    %1018 = vmatprep.subr.mxu0 0.0
    %1019 = vmatpush1.msra.mxu0 %v966
    %1020 = vmatprep.subr.mxu0 0.0
    %1021 = vmatpush1.msra.mxu0 %v967
    %1022 = vmatprep.subr.mxu0 0.0
    %1023 = vmatpush1.msra.mxu0 %v968
    %1024 = vmatprep.subr.mxu0 0.0
    %1025 = vmatpush1.msra.mxu0 %v969
    %1026 = vmatprep.subr.mxu0 0.0
    %1027 = vmatpush1.msra.mxu0 %v970
    %1028 = vmatprep.subr.mxu0 0.0
    %1029 = vmatpush1.msra.mxu0 %v971
    %1030 = vmatprep.subr.mxu0 0.0
    %1031 = vmatpush1.msra.mxu0 %v972
    %1032 = vmatprep.subr.mxu0 0.0
    %1033 = vmatpush1.msra.mxu0 %v973
    %1034 = vmatprep.subr.mxu0 0.0
    %1035 = vmatpush1.msra.mxu0 %v974
    %1036 = vmatprep.subr.mxu0 0.0
    %1037 = vmatpush1.msra.mxu0 %v975
    %1038 = vmatprep.subr.mxu0 0.0
    %1039 = vmatpush1.msra.mxu0 %v976
    %1040 = vmatprep.subr.mxu0 0.0
    %1041 = vmatpush1.msra.mxu0 %v977
    %1042 = vmatprep.subr.mxu0 0.0
    %1043 = vmatpush1.msra.mxu0 %v978
    %1044 = vmatprep.subr.mxu0 0.0
    %1045 = vmatpush1.msra.mxu0 %v979
    %1046 = vmatprep.subr.mxu0 0.0
    %1047 = vmatpush1.msra.mxu0 %v980
    %1048 = vmatprep.subr.mxu0 0.0
    %1049 = vmatpush1.msra.mxu0 %v981
    %1050 = vmatprep.subr.mxu0 0.0
    %1051 = vmatpush1.msra.mxu0 %v982
    %1052 = vmatprep.subr.mxu0 0.0
    %1053 = vmatpush1.msra.mxu0 %v983
    %1054 = vmatprep.subr.mxu0 0.0
    %1055 = vmatpush1.msra.mxu0 %v984
    %1056 = vmatprep.mubr.f32.mxu0 %v890
    %1057 = vmatmul.mubr.f32.gmra.mrb[0].mxu0 %v889
    %v1058 = vpop.f32.mrb[0].mxu0
    %v1059 = vadd.f32 %v990, %v1058
    %v1060 = vpop.f32.mrb[0].mxu0
    %1061 = vmatprep.mubr.f32.mxu0 %v892
    %1062 = vmatmul.mubr.f32.gmra.mrb[0].mxu0 %v891
    %v1063 = vpop.f32.mrb[0].mxu0
    %v1064 = vadd.f32 %v990, %v1063
    %v1065 = vpop.f32.mrb[0].mxu0
    %1066 = vmatprep.mubr.f32.mxu0 %v894
    %1067 = vmatmul.mubr.f32.gmra.mrb[0].mxu0 %v893
    %v1068 = vpop.f32.mrb[0].mxu0
    %v1069 = vadd.f32 %v990, %v1068
    %v1070 = vpop.f32.mrb[0].mxu0
    %1071 = vmatprep.mubr.f32.mxu0 %v896
    %1072 = vmatmul.mubr.f32.gmra.mrb[0].mxu0 %v895
    %v1073 = vpop.f32.mrb[0].mxu0
    %v1074 = vadd.f32 %v990, %v1073
    %v1075 = vpop.f32.mrb[0].mxu0
    %1076 = vmatprep.mubr.f32.mxu0 %v898
    %1077 = vmatmul.mubr.f32.gmra.mrb[0].mxu0 %v897
    %v1078 = vpop.f32.mrb[0].mxu0
    %v1079 = vadd.f32 %v990, %v1078
    %v1080 = vpop.f32.mrb[0].mxu0
    %1081 = vmatprep.mubr.f32.mxu0 %v900
    %1082 = vmatmul.mubr.f32.gmra.mrb[0].mxu0 %v899
    %v1083 = vpop.f32.mrb[0].mxu0
    %v1084 = vadd.f32 %v990, %v1083
    %v1085 = vpop.f32.mrb[0].mxu0
    %1086 = vmatprep.mubr.f32.mxu0 %v902
    %1087 = vmatmul.mubr.f32.gmra.mrb[0].mxu0 %v901
    %v1088 = vpop.f32.mrb[0].mxu0
    %v1089 = vadd.f32 %v990, %v1088
    %v1090 = vpop.f32.mrb[0].mxu0
    %1091 = vmatprep.mubr.f32.mxu0 %v904
    %1092 = vmatmul.mubr.f32.gmra.mrb[0].mxu0 %v903
    %v1093 = vpop.f32.mrb[0].mxu0
    %v1094 = vadd.f32 %v990, %v1093
    %v1095 = vpop.f32.mrb[0].mxu0
    %1096 = vmatprep.mubr.f32.mxu0 %v906
    %1097 = vmatmul.mubr.f32.gmra.mrb[0].mxu0 %v905
    %v1098 = vpop.f32.mrb[0].mxu0
    %v1099 = vadd.f32 %v990, %v1098
    %v1100 = vpop.f32.mrb[0].mxu0
    %1101 = vmatprep.mubr.f32.mxu0 %v908
    %1102 = vmatmul.mubr.f32.gmra.mrb[0].mxu0 %v907
    %v1103 = vpop.f32.mrb[0].mxu0
    %v1104 = vadd.f32 %v990, %v1103
    %v1105 = vpop.f32.mrb[0].mxu0
    %1106 = vmatprep.mubr.f32.mxu0 %v910
    %1107 = vmatmul.mubr.f32.gmra.mrb[0].mxu0 %v909
    %v1108 = vpop.f32.mrb[0].mxu0
    %v1109 = vadd.f32 %v990, %v1108
    %v1110 = vpop.f32.mrb[0].mxu0
    %1111 = vmatprep.mubr.f32.mxu0 %v912
    %1112 = vmatmul.mubr.f32.gmra.mrb[0].mxu0 %v911
    %v1113 = vpop.f32.mrb[0].mxu0
    %v1114 = vadd.f32 %v990, %v1113
    %v1115 = vpop.f32.mrb[0].mxu0
    %1116 = vmatprep.mubr.f32.mxu0 %v914
    %1117 = vmatmul.mubr.f32.gmra.mrb[0].mxu0 %v913
    %v1118 = vpop.f32.mrb[0].mxu0
    %v1119 = vadd.f32 %v990, %v1118
    %v1120 = vpop.f32.mrb[0].mxu0
    %1121 = vmatprep.mubr.f32.mxu0 %v916
    %1122 = vmatmul.mubr.f32.gmra.mrb[0].mxu0 %v915
    %v1123 = vpop.f32.mrb[0].mxu0
    %v1124 = vadd.f32 %v990, %v1123
    %v1125 = vpop.f32.mrb[0].mxu0
    %1126 = vmatprep.mubr.f32.mxu0 %v918
    %1127 = vmatmul.mubr.f32.gmra.mrb[0].mxu0 %v917
    %v1128 = vpop.f32.mrb[0].mxu0
    %v1129 = vadd.f32 %v990, %v1128
    %v1130 = vpop.f32.mrb[0].mxu0
    %1131 = vmatprep.mubr.f32.mxu0 %v920
    %1132 = vmatmul.mubr.f32.gmra.mrb[0].mxu0 %v919
    %v1133 = vpop.f32.mrb[0].mxu0
    %v1134 = vadd.f32 %v990, %v1133
    %v1135 = vpop.f32.mrb[0].mxu0
    %1136 = vmatprep.mubr.f32.mxu0 %v922
    %1137 = vmatmul.mubr.f32.gmra.mrb[0].mxu0 %v921
    %v1138 = vpop.f32.mrb[0].mxu0
    %v1139 = vadd.f32 %v990, %v1138
    %v1140 = vpop.f32.mrb[0].mxu0
    %1141 = vmatprep.mubr.f32.mxu0 %v924
    %1142 = vmatmul.mubr.f32.gmra.mrb[0].mxu0 %v923
    %v1143 = vpop.f32.mrb[0].mxu0
    %v1144 = vadd.f32 %v990, %v1143
    %v1145 = vpop.f32.mrb[0].mxu0
    %1146 = vmatprep.mubr.f32.mxu0 %v926
    %1147 = vmatmul.mubr.f32.gmra.mrb[0].mxu0 %v925
    %v1148 = vpop.f32.mrb[0].mxu0
    %v1149 = vadd.f32 %v990, %v1148
    %v1150 = vpop.f32.mrb[0].mxu0
    %1151 = vmatprep.mubr.f32.mxu0 %v928
    %1152 = vmatmul.mubr.f32.gmra.mrb[0].mxu0 %v927
    %v1153 = vpop.f32.mrb[0].mxu0
    %v1154 = vadd.f32 %v990, %v1153
    %v1155 = vpop.f32.mrb[0].mxu0
    %1156 = vmatprep.mubr.f32.mxu0 %v930
    %1157 = vmatmul.mubr.f32.gmra.mrb[0].mxu0 %v929
    %v1158 = vpop.f32.mrb[0].mxu0
    %v1159 = vadd.f32 %v990, %v1158
    %v1160 = vpop.f32.mrb[0].mxu0
    %1161 = vmatprep.mubr.f32.mxu0 %v932
    %1162 = vmatmul.mubr.f32.gmra.mrb[0].mxu0 %v931
    %v1163 = vpop.f32.mrb[0].mxu0
    %v1164 = vadd.f32 %v990, %v1163
    %v1165 = vpop.f32.mrb[0].mxu0
    %1166 = vmatprep.mubr.f32.mxu0 %v934
    %1167 = vmatmul.mubr.f32.gmra.mrb[0].mxu0 %v933
    %v1168 = vpop.f32.mrb[0].mxu0
    %v1169 = vadd.f32 %v990, %v1168
    %v1170 = vpop.f32.mrb[0].mxu0
    %1171 = vmatprep.mubr.f32.mxu0 %v936
    %1172 = vmatmul.mubr.f32.gmra.mrb[0].mxu0 %v935
    %v1173 = vpop.f32.mrb[0].mxu0
    %v1174 = vadd.f32 %v990, %v1173
    %v1175 = vpop.f32.mrb[0].mxu0
    %1176 = vmatprep.mubr.f32.mxu0 %v938
    %1177 = vmatmul.mubr.f32.gmra.mrb[0].mxu0 %v937
    %v1178 = vpop.f32.mrb[0].mxu0
    %v1179 = vadd.f32 %v990, %v1178
    %v1180 = vpop.f32.mrb[0].mxu0
    %1181 = vmatprep.mubr.f32.mxu0 %v940
    %1182 = vmatmul.mubr.f32.gmra.mrb[0].mxu0 %v939
    %v1183 = vpop.f32.mrb[0].mxu0
    %v1184 = vadd.f32 %v990, %v1183
    %v1185 = vpop.f32.mrb[0].mxu0
    %1186 = vmatprep.mubr.f32.mxu0 %v942
    %1187 = vmatmul.mubr.f32.gmra.mrb[0].mxu0 %v941
    %v1188 = vpop.f32.mrb[0].mxu0
    %v1189 = vadd.f32 %v990, %v1188
    %v1190 = vpop.f32.mrb[0].mxu0
    %1191 = vmatprep.mubr.f32.mxu0 %v944
    %1192 = vmatmul.mubr.f32.gmra.mrb[0].mxu0 %v943
    %v1193 = vpop.f32.mrb[0].mxu0
    %v1194 = vadd.f32 %v990, %v1193
    %v1195 = vpop.f32.mrb[0].mxu0
    %1196 = vmatprep.mubr.f32.mxu0 %v946
    %1197 = vmatmul.mubr.f32.gmra.mrb[0].mxu0 %v945
    %v1198 = vpop.f32.mrb[0].mxu0
    %v1199 = vadd.f32 %v990, %v1198
    %v1200 = vpop.f32.mrb[0].mxu0
    %1201 = vmatprep.mubr.f32.mxu0 %v948
    %1202 = vmatmul.mubr.f32.gmra.mrb[0].mxu0 %v947
    %v1203 = vpop.f32.mrb[0].mxu0
    %v1204 = vadd.f32 %v990, %v1203
    %v1205 = vpop.f32.mrb[0].mxu0
    %1206 = vmatprep.mubr.f32.mxu0 %v950
    %1207 = vmatmul.mubr.f32.gmra.mrb[0].mxu0 %v949
    %v1208 = vpop.f32.mrb[0].mxu0
    %v1209 = vadd.f32 %v990, %v1208
    %v1210 = vpop.f32.mrb[0].mxu0
    %1211 = vmatprep.mubr.f32.mxu0 %v952
    %1212 = vmatmul.mubr.f32.gmra.mrb[0].mxu0 %v951
    %v1213 = vpop.f32.mrb[0].mxu0
    %v1214 = vadd.f32 %v990, %v1213
    %v1215 = vpop.f32.mrb[0].mxu0
    %1216 = vdwg.mxu0
    %1217 = vst [vmem:[#allocation10] sm:$0xff] %v1059
    %1218 = vst [vmem:[#allocation10 + $0x8] sm:$0xff] %v1064
    %1219 = vst [vmem:[#allocation10 + $0x10] sm:$0xff] %v1069
    %1220 = vst [vmem:[#allocation10 + $0x18] sm:$0xff] %v1074
    %1221 = vst [vmem:[#allocation10 + $0x20] sm:$0xff] %v1079
    %1222 = vst [vmem:[#allocation10 + $0x28] sm:$0xff] %v1084
    %1223 = vst [vmem:[#allocation10 + $0x30] sm:$0xff] %v1089
    %1224 = vst [vmem:[#allocation10 + $0x38] sm:$0xff] %v1094
    %1225 = vst [vmem:[#allocation10 + $0x40] sm:$0xff] %v1099
    %1226 = vst [vmem:[#allocation10 + $0x48] sm:$0xff] %v1104
    %1227 = vst [vmem:[#allocation10 + $0x50] sm:$0xff] %v1109
    %1228 = vst [vmem:[#allocation10 + $0x58] sm:$0xff] %v1114
    %1229 = vst [vmem:[#allocation10 + $0x60] sm:$0xff] %v1119
    %1230 = vst [vmem:[#allocation10 + $0x68] sm:$0xff] %v1124
    %1231 = vst [vmem:[#allocation10 + $0x70] sm:$0xff] %v1129
    %1232 = vst [vmem:[#allocation10 + $0x78] sm:$0xff] %v1134
    %1233 = vst [vmem:[#allocation10 + $0x80] sm:$0xff] %v1139
    %1234 = vst [vmem:[#allocation10 + $0x88] sm:$0xff] %v1144
    %1235 = vst [vmem:[#allocation10 + $0x90] sm:$0xff] %v1149
    %1236 = vst [vmem:[#allocation10 + $0x98] sm:$0xff] %v1154
    %1237 = vst [vmem:[#allocation10 + $0xa0] sm:$0xff] %v1159
    %1238 = vst [vmem:[#allocation10 + $0xa8] sm:$0xff] %v1164
    %1239 = vst [vmem:[#allocation10 + $0xb0] sm:$0xff] %v1169
    %1240 = vst [vmem:[#allocation10 + $0xb8] sm:$0xff] %v1174
    %1241 = vst [vmem:[#allocation10 + $0xc0] sm:$0xff] %v1179
    %1242 = vst [vmem:[#allocation10 + $0xc8] sm:$0xff] %v1184
    %1243 = vst [vmem:[#allocation10 + $0xd0] sm:$0xff] %v1189
    %1244 = vst [vmem:[#allocation10 + $0xd8] sm:$0xff] %v1194
    %1245 = vst [vmem:[#allocation10 + $0xe0] sm:$0xff] %v1199
    %1246 = vst [vmem:[#allocation10 + $0xe8] sm:$0xff] %v1204
    %1247 = vst [vmem:[#allocation10 + $0xf0] sm:$0xff] %v1209
    %1248 = vst [vmem:[#allocation10 + $0xf8] sm:$0xff] %v1214
    // Predicated region
    $region46: #{tpu_custom_call.1} parent=1 // pred_check
      _
    $region47: #{tpu_custom_call.1} parent=1 // pred_check_branch
      %1250 = sbr.rel (0) target = $region49
    $region48: #{tpu_custom_call.1} parent=1 // pred_region
      %s1252 = ssub.s32 4096, 256
      %1253 = vsyncadd [#allocation4], %s1252
      %s1254 = sshll.u32 [#allocation10], 4
      %s1255 = int_to_ptr.vmem [resolvable:$true] %s1254
      %1260 = dma.vmem_to_hbm [thread:$0]  %s1255, 256, %s7, [#allocation4], 128, 128, 8
    $region49: #{tpu_custom_call.1} parent=1 // pred_fallthru
      _
    // Predicated region
    $region50: #{tpu_custom_call.1} parent=1 // pred_check
      _
    $region51: #{tpu_custom_call.1} parent=1 // pred_check_branch
      %1262 = sbr.rel (0) target = $region53
    $region52: #{tpu_custom_call.1} parent=1 // pred_region
      %1263 = dma.done [#allocation4], 4096
    $region53: #{tpu_custom_call.1} parent=1 // pred_fallthru
      _
    %1264 = vsyncpa [#allocation3], 1
    %1265 = vsyncpa [#allocation6], 1
    %1266 = vsyncpa [#allocation9], 1
    %1267 = vsyncpa [#allocation4], 1

</llo_original>
